<compile_context>
chip_gen: v5e
topology: v5e:2x2
jax: 0.10.0
libtpu: 0.0.40
codegen_flags: <defaults>
</compile_context>

<pallas_src>
import numpy as np
import jax
import jax.numpy as jnp
from jax.experimental import pallas as pl
from jax.experimental.pallas import tpu as pltpu

# ----------------------------- model config ---------------------------------
X_SIZE = 12                 # x_size
LATENT = 6                  # latent_size
HIDDEN = [32, 32, 32]       # hidden_size (create_Coder hidden stack)
BATCH = 16                  # total samples after x.view(-1, x_size)
LANE = 128
EPS_OFF = 16                # lane offset of eps inside the packed (x|eps) tile
NTRI = X_SIZE * (X_SIZE - 1) // 2      # _strictly_tril_size(x_size)
LOG2PI = float(np.log(2.0 * np.pi))


def _elu(v):
    # nn.ELU(alpha=1): v if v > 0 else exp(v) - 1
    return jnp.where(v > 0, v, jnp.exp(jnp.minimum(v, 0.0)) - 1.0)


# ------------------------------ Pallas kernel --------------------------------
def _make_vae_kernel(meta, n_hidden, d, z, btile, b_total):
    """meta[i] = (w_row, w_rows_padded, b_row): static row offsets into the
    packed (rows, 128) parameter slab.  Layer order: enc hidden*n, enc fused
    (mu|logvar) head, dec hidden*n, dec fused (mu|logvar|rho) head."""
    rho_off = 2 * d                          # rho starts at lane 2*d of hd

    def kernel(xin_ref, slab_ref, out_ref):
        def linear(h, idx):
            wr, wk, br = meta[idx]
            # aligned full-lane loads: (wk, 128) weight block, (1, 128) bias row
            w = slab_ref[pl.ds(wr, wk), :]
            b = slab_ref[pl.ds(br, 1), :]
            return jnp.dot(h[:, :wk], w, preferred_element_type=jnp.float32) + b

        packed = xin_ref[...]                # (BT,128): x | 0 | eps | 0 (explicit zeros)
        lane = jax.lax.broadcasted_iota(jnp.int32, (btile, LANE), 1)

        # ---------------- encoder (full_cov=False) ----------------
        h = packed
        for li in range(n_hidden):
            h = _elu(linear(h, li))
        he = linear(h, n_hidden)             # lanes: mu_e(0..z-1) | raw logvar(z..2z-1) | 0
        logvar_e = -_elu(pltpu.roll(he, shift=LANE - z, axis=1))   # aligned to lanes 0..z-1

        # ---------------- reparametrize ----------------
        eps_al = pltpu.roll(packed, shift=LANE - EPS_OFF, axis=1)  # eps at lanes 0..z-1
        zlat = eps_al * jnp.exp(0.5 * logvar_e) + he               # lanes 0..z-1 valid

        # ---------------- decoder (full_cov=True, scale_tril) ----------------
        h = zlat
        for li in range(n_hidden):
            h = _elu(linear(h, n_hidden + 1 + li))
        hd = linear(h, 2 * n_hidden + 1)     # lanes: mu_d(0..d-1) | raw logvar(d..2d-1) | rho | 0

        logvar_d = -_elu(pltpu.roll(hd, shift=LANE - d, axis=1))
        logvar_d = jnp.where(lane < d, logvar_d, 0.0)              # mask junk lanes
        inv_diag = jnp.exp(-0.5 * logvar_d)                        # exact 1/diag(L)
        diff = packed - hd                                         # lanes 0..d-1 = x - mu_d

        # ---------------- MVN(scale_tril=L).log_prob(x) ----------------
        # Forward substitution; L row i is built by rolling rho into lanes 0..i-1.
        # y[lane >= i] == 0 at step i, so no explicit row masks are needed.
        y = jnp.zeros((btile, LANE), jnp.float32)
        for i in range(d):
            if i == 0:
                yi = diff * inv_diag
            else:
                off = rho_off + i * (i - 1) // 2                   # tril row-major offset
                row = pltpu.roll(hd, shift=LANE - off, axis=1)     # L[i, j] at lane j (j < i)
                s = jnp.sum(row * y, axis=1, keepdims=True)        # (BT, 1)
                yi = (diff - s) * inv_diag
            y = jnp.where(lane == i, yi, y)                        # keep only lane i

        quad = jnp.sum(y * y, axis=1, keepdims=True)               # (BT, 1)
        logdet = 0.5 * jnp.sum(logvar_d, axis=1, keepdims=True)    # sum log(diag L)
        logp = -0.5 * d * LOG2PI - logdet - 0.5 * quad             # (BT, 1)

        # ---------------- KL term ----------------
        kl = -1.0 - logvar_e + he * he + jnp.exp(logvar_e)         # mu_e lives in he lanes 0..z-1
        kl = jnp.where(lane < z, kl, 0.0)
        kl_sum = jnp.sum(jnp.sum(kl, axis=1, keepdims=True), axis=0, keepdims=True)
        neglogp_sum = jnp.sum(-logp, axis=0, keepdims=True)

        # single write: (rec + kld), means over the batch
        out_ref[...] = (neglogp_sum + 0.5 * kl_sum) * (1.0 / b_total)

    return kernel


def vae_loss_pallas(packed, slab, meta):
    bt = packed.shape[0]
    kernel = _make_vae_kernel(meta, len(HIDDEN), X_SIZE, LATENT, bt, bt)

    # advisory cost estimate so XLA can overlap this tiny latency-bound call
    dims = [(16, 32), (32, 32), (32, 32), (32, 12),
            (8, 32), (32, 32), (32, 32), (32, 90)]
    flops = 2 * bt * sum(k * n for k, n in dims) + 4 * bt * X_SIZE * LANE
    transcendentals = bt * LANE * (2 * len(HIDDEN) + 6)
    bytes_accessed = int(slab.size * 4 + packed.size * 4 + 4)

    return pl.pallas_call(
        kernel,
        out_shape=jax.ShapeDtypeStruct((1, 1), jnp.float32),
        grid=(1,),
        in_specs=[
            pl.BlockSpec((bt, LANE), lambda i: (0, 0)),     # packed x|eps tile (one DMA)
            pl.BlockSpec(slab.shape, lambda i: (0, 0)),     # packed parameter slab (one DMA)
        ],
        out_specs=pl.BlockSpec((1, 1), lambda i: (0, 0)),
        compiler_params=pltpu.CompilerParams(dimension_semantics=("arbitrary",)),
        cost_estimate=pl.CostEstimate(flops=int(flops),
                                      transcendentals=int(transcendentals),
                                      bytes_accessed=bytes_accessed),
    )(packed, slab)


# ------------------------- deterministic parameters --------------------------
def _linear(key, fan_in, fan_out):
    k1, k2 = jax.random.split(key)
    bound = 1.0 / np.sqrt(fan_in)
    w = jax.random.uniform(k1, (fan_in, fan_out), jnp.float32, -bound, bound)
    b = jax.random.uniform(k2, (1, fan_out), jnp.float32, -bound, bound)
    return w, b


def _init_coder(key, in_size, out_size, hidden, full_cov):
    keys = jax.random.split(key, len(hidden) + 3)
    params, prev = [], in_size
    for i, h in enumerate(hidden):
        params.append(_linear(keys[i], prev, h))
        prev = h
    params.append(_linear(keys[len(hidden)], prev, out_size))        # output_mu
    params.append(_linear(keys[len(hidden) + 1], prev, out_size))    # output_logvar
    if full_cov:
        params.append(_linear(keys[len(hidden) + 2], prev,
                              out_size * (out_size - 1) // 2))       # output_chol_net
    return params


def _pack_params(enc, dec, n_hidden):
    """Pack all weights / biases (with fused output heads) into one lane-dense
    (rows, 128) f32 slab.  Each tensor starts on an 8-sublane-aligned row and
    is zero padded to (ceil(k/8)*8, 128).  Returns (slab, meta) where
    meta[i] = (w_row, w_rows_padded, b_row)."""
    layers = []
    for w, b in enc[:n_hidden]:
        layers.append((np.asarray(w), np.asarray(b)))
    layers.append((np.concatenate([np.asarray(enc[-2][0]), np.asarray(enc[-1][0])], axis=1),
                   np.concatenate([np.asarray(enc[-2][1]), np.asarray(enc[-1][1])], axis=1)))
    for w, b in dec[:n_hidden]:
        layers.append((np.asarray(w), np.asarray(b)))
    layers.append((np.concatenate([np.asarray(dec[-3][0]), np.asarray(dec[-2][0]),
                                   np.asarray(dec[-1][0])], axis=1),
                   np.concatenate([np.asarray(dec[-3][1]), np.asarray(dec[-2][1]),
                                   np.asarray(dec[-1][1])], axis=1)))

    blocks, meta = [], []
    cur = 0

    def add(t):
        nonlocal cur
        t = np.asarray(t, np.float32)
        k, n = t.shape
        rows = -(-k // 8) * 8
        blk = np.zeros((rows, LANE), np.float32)
        blk[:k, :n] = t
        start = cur
        blocks.append(blk)
        cur += rows
        return start, rows

    for w, b in layers:
        wr, wrows = add(w)
        br, _ = add(b)
        meta.append((wr, wrows, br))
    slab = np.concatenate(blocks, axis=0)
    return jnp.asarray(slab), tuple(meta)


# ----------------------------- pure-JAX reference ----------------------------
def reference_loss(x, eps, enc, dec, rows, cols):
    d = x.shape[1]
    h = x
    for w, b in enc[:-2]:
        h = jax.nn.elu(h @ w + b)
    mu_e = h @ enc[-2][0] + enc[-2][1]
    logvar_e = -jax.nn.elu(h @ enc[-1][0] + enc[-1][1])
    zlat = eps * jnp.exp(0.5 * logvar_e) + mu_e
    h = zlat
    for w, b in dec[:-3]:
        h = jax.nn.elu(h @ w + b)
    mu_d = h @ dec[-3][0] + dec[-3][1]
    logvar_d = -jax.nn.elu(h @ dec[-2][0] + dec[-2][1])
    rho = h @ dec[-1][0] + dec[-1][1]
    diag_a = jnp.exp(0.5 * logvar_d)
    bsz = x.shape[0]
    chol = jnp.zeros((bsz, d, d), jnp.float32).at[:, rows, cols].set(rho)
    chol = chol + diag_a[:, :, None] * jnp.eye(d, dtype=jnp.float32)
    diff = x - mu_d
    y = jax.scipy.linalg.solve_triangular(chol, diff[:, :, None], lower=True)[..., 0]
    logp = (-0.5 * d * LOG2PI - jnp.sum(jnp.log(diag_a), axis=1)
            - 0.5 * jnp.sum(y * y, axis=1))
    rec = -jnp.mean(logp)
    kl = -1.0 - logvar_e + mu_e ** 2 + jnp.exp(logvar_e)
    kld = jnp.mean(jnp.sum(kl, axis=1) / 2.0)
    return rec + kld


# ---------------------------------- main --------------------------------------
if __name__ == "__main__":
    key = jax.random.PRNGKey(0)
    kx, keps, kenc, kdec = jax.random.split(key, 4)

    # x.view(-1, x_size): passed already flattened to [BATCH, X_SIZE]; x_std = 1.0
    x = jax.random.normal(kx, (BATCH, X_SIZE), jnp.float32)
    # eps.normal_() in reparametrize: pre-sampled deterministically and fed in
    eps = jax.random.normal(keps, (BATCH, LATENT), jnp.float32)

    enc_params = _init_coder(kenc, X_SIZE, LATENT, HIDDEN, full_cov=False)
    dec_params = _init_coder(kdec, LATENT, X_SIZE, HIDDEN, full_cov=True)

    slab, meta = _pack_params(enc_params, dec_params, len(HIDDEN))

    # single lane-dense input tile: x in lanes 0..11, explicit zeros, eps in 16..21
    packed = np.zeros((BATCH, LANE), np.float32)
    packed[:, :X_SIZE] = np.asarray(x)
    packed[:, EPS_OFF:EPS_OFF + LATENT] = np.asarray(eps)
    packed = jnp.asarray(packed)

    loss = vae_loss_pallas(packed, slab, meta)
    loss = jax.block_until_ready(loss)

    rows, cols = np.tril_indices(X_SIZE, k=-1)   # matches torch.tril_indices(D, D, -1)
    ref = reference_loss(x, eps, enc_params, dec_params, rows, cols)
    np.testing.assert_allclose(np.asarray(loss)[0, 0], np.asarray(ref),
                               rtol=5e-2, atol=5e-2)

    print("KERNEL_OK")
</pallas_src>

<mosaic_0001>
module attributes {stable_mosaic.version = 11 : i64} {
  func.func @kernel(%arg0: i32, %arg1: memref<16x128xf32, #tpu.memory_space<vmem>>, %arg2: memref<280x128xf32, #tpu.memory_space<vmem>>, %arg3: memref<1x1xf32, #tpu.memory_space<vmem>>) attributes {dimension_semantics = [#tpu.dimension_semantics<arbitrary>], iteration_bounds = array<i64: 1>, scalar_prefetch = 0 : i64, scratch_operands = 0 : i64, tpu.core_type = #tpu.core_type<tc>, window_params = [{pipeline_mode = #tpu.pipeline_mode<synchronous>, transform_indices = @transform_0, window_bounds = array<i64: 16, 128>}, {pipeline_mode = #tpu.pipeline_mode<synchronous>, transform_indices = @transform_1, window_bounds = array<i64: 280, 128>}, {pipeline_mode = #tpu.pipeline_mode<synchronous>, transform_indices = @transform_2, window_bounds = array<i64: 1, 1>}]} {
    %c0 = arith.constant 0 : index
    %c0_0 = arith.constant 0 : index
    %0 = vector.load %arg1[%c0, %c0_0] : memref<16x128xf32, #tpu.memory_space<vmem>>, vector<16x128xf32>
    %1 = tpu.iota {dimensions = array<i32: 1>} : vector<16x128xi32>
    %c0_1 = arith.constant 0 : index
    %c0_2 = arith.constant 0 : index
    %2 = vector.load %arg2[%c0_1, %c0_2] : memref<280x128xf32, #tpu.memory_space<vmem>>, vector<16x128xf32>
    %c16 = arith.constant 16 : index
    %c0_3 = arith.constant 0 : index
    %3 = vector.load %arg2[%c16, %c0_3] : memref<280x128xf32, #tpu.memory_space<vmem>>, vector<1x128xf32>
    %4 = vector.extract_strided_slice %0 {offsets = [0, 0], sizes = [16, 16], strides = [1, 1]} : vector<16x128xf32> to vector<16x16xf32>
    %cst = arith.constant dense<0.000000e+00> : vector<16x128xf32>
    %5 = tpu.matmul %4, %2, %cst {dimension_numbers = #tpu.dot_dimension_numbers<[1], [0], [0], [1], [0, 0, 1, 1], [], []>} : vector<16x16xf32>, vector<16x128xf32>, vector<16x128xf32> -> vector<16x128xf32>
    %6 = vector.broadcast %3 : vector<1x128xf32> to vector<16x128xf32>
    %7 = arith.addf %5, %6 : vector<16x128xf32>
    %cst_4 = arith.constant 0.000000e+00 : f32
    %8 = vector.broadcast %cst_4 : f32 to vector<16x128xf32>
    %9 = arith.cmpf ogt, %7, %8 : vector<16x128xf32>
    %cst_5 = arith.constant 0.000000e+00 : f32
    %10 = vector.broadcast %cst_5 : f32 to vector<16x128xf32>
    %11 = arith.minimumf %7, %10 : vector<16x128xf32>
    %12 = math.exp %11 : vector<16x128xf32>
    %cst_6 = arith.constant 1.000000e+00 : f32
    %13 = vector.broadcast %cst_6 : f32 to vector<16x128xf32>
    %14 = arith.subf %12, %13 : vector<16x128xf32>
    %15 = arith.select %9, %7, %14 : vector<16x128xi1>, vector<16x128xf32>
    %c24 = arith.constant 24 : index
    %c0_7 = arith.constant 0 : index
    %16 = vector.load %arg2[%c24, %c0_7] : memref<280x128xf32, #tpu.memory_space<vmem>>, vector<32x128xf32>
    %c56 = arith.constant 56 : index
    %c0_8 = arith.constant 0 : index
    %17 = vector.load %arg2[%c56, %c0_8] : memref<280x128xf32, #tpu.memory_space<vmem>>, vector<1x128xf32>
    %18 = vector.extract_strided_slice %15 {offsets = [0, 0], sizes = [16, 32], strides = [1, 1]} : vector<16x128xf32> to vector<16x32xf32>
    %cst_9 = arith.constant dense<0.000000e+00> : vector<16x128xf32>
    %19 = tpu.matmul %18, %16, %cst_9 {dimension_numbers = #tpu.dot_dimension_numbers<[1], [0], [0], [1], [0, 0, 1, 1], [], []>} : vector<16x32xf32>, vector<32x128xf32>, vector<16x128xf32> -> vector<16x128xf32>
    %20 = vector.broadcast %17 : vector<1x128xf32> to vector<16x128xf32>
    %21 = arith.addf %19, %20 : vector<16x128xf32>
    %cst_10 = arith.constant 0.000000e+00 : f32
    %22 = vector.broadcast %cst_10 : f32 to vector<16x128xf32>
    %23 = arith.cmpf ogt, %21, %22 : vector<16x128xf32>
    %cst_11 = arith.constant 0.000000e+00 : f32
    %24 = vector.broadcast %cst_11 : f32 to vector<16x128xf32>
    %25 = arith.minimumf %21, %24 : vector<16x128xf32>
    %26 = math.exp %25 : vector<16x128xf32>
    %cst_12 = arith.constant 1.000000e+00 : f32
    %27 = vector.broadcast %cst_12 : f32 to vector<16x128xf32>
    %28 = arith.subf %26, %27 : vector<16x128xf32>
    %29 = arith.select %23, %21, %28 : vector<16x128xi1>, vector<16x128xf32>
    %c64 = arith.constant 64 : index
    %c0_13 = arith.constant 0 : index
    %30 = vector.load %arg2[%c64, %c0_13] : memref<280x128xf32, #tpu.memory_space<vmem>>, vector<32x128xf32>
    %c96 = arith.constant 96 : index
    %c0_14 = arith.constant 0 : index
    %31 = vector.load %arg2[%c96, %c0_14] : memref<280x128xf32, #tpu.memory_space<vmem>>, vector<1x128xf32>
    %32 = vector.extract_strided_slice %29 {offsets = [0, 0], sizes = [16, 32], strides = [1, 1]} : vector<16x128xf32> to vector<16x32xf32>
    %cst_15 = arith.constant dense<0.000000e+00> : vector<16x128xf32>
    %33 = tpu.matmul %32, %30, %cst_15 {dimension_numbers = #tpu.dot_dimension_numbers<[1], [0], [0], [1], [0, 0, 1, 1], [], []>} : vector<16x32xf32>, vector<32x128xf32>, vector<16x128xf32> -> vector<16x128xf32>
    %34 = vector.broadcast %31 : vector<1x128xf32> to vector<16x128xf32>
    %35 = arith.addf %33, %34 : vector<16x128xf32>
    %cst_16 = arith.constant 0.000000e+00 : f32
    %36 = vector.broadcast %cst_16 : f32 to vector<16x128xf32>
    %37 = arith.cmpf ogt, %35, %36 : vector<16x128xf32>
    %cst_17 = arith.constant 0.000000e+00 : f32
    %38 = vector.broadcast %cst_17 : f32 to vector<16x128xf32>
    %39 = arith.minimumf %35, %38 : vector<16x128xf32>
    %40 = math.exp %39 : vector<16x128xf32>
    %cst_18 = arith.constant 1.000000e+00 : f32
    %41 = vector.broadcast %cst_18 : f32 to vector<16x128xf32>
    %42 = arith.subf %40, %41 : vector<16x128xf32>
    %43 = arith.select %37, %35, %42 : vector<16x128xi1>, vector<16x128xf32>
    %c104 = arith.constant 104 : index
    %c0_19 = arith.constant 0 : index
    %44 = vector.load %arg2[%c104, %c0_19] : memref<280x128xf32, #tpu.memory_space<vmem>>, vector<32x128xf32>
    %c136 = arith.constant 136 : index
    %c0_20 = arith.constant 0 : index
    %45 = vector.load %arg2[%c136, %c0_20] : memref<280x128xf32, #tpu.memory_space<vmem>>, vector<1x128xf32>
    %46 = vector.extract_strided_slice %43 {offsets = [0, 0], sizes = [16, 32], strides = [1, 1]} : vector<16x128xf32> to vector<16x32xf32>
    %cst_21 = arith.constant dense<0.000000e+00> : vector<16x128xf32>
    %47 = tpu.matmul %46, %44, %cst_21 {dimension_numbers = #tpu.dot_dimension_numbers<[1], [0], [0], [1], [0, 0, 1, 1], [], []>} : vector<16x32xf32>, vector<32x128xf32>, vector<16x128xf32> -> vector<16x128xf32>
    %48 = vector.broadcast %45 : vector<1x128xf32> to vector<16x128xf32>
    %49 = arith.addf %47, %48 : vector<16x128xf32>
    %c122_i32 = arith.constant 122 : i32
    %50 = tpu.dynamic_rotate %49 by %c122_i32 dim 1 : vector<16x128xf32>, i32 -> vector<16x128xf32>
    %cst_22 = arith.constant 0.000000e+00 : f32
    %51 = vector.broadcast %cst_22 : f32 to vector<16x128xf32>
    %52 = arith.cmpf ogt, %50, %51 : vector<16x128xf32>
    %cst_23 = arith.constant 0.000000e+00 : f32
    %53 = vector.broadcast %cst_23 : f32 to vector<16x128xf32>
    %54 = arith.minimumf %50, %53 : vector<16x128xf32>
    %55 = math.exp %54 : vector<16x128xf32>
    %cst_24 = arith.constant 1.000000e+00 : f32
    %56 = vector.broadcast %cst_24 : f32 to vector<16x128xf32>
    %57 = arith.subf %55, %56 : vector<16x128xf32>
    %58 = arith.select %52, %50, %57 : vector<16x128xi1>, vector<16x128xf32>
    %cst_25 = arith.constant 0.000000e+00 : f32
    %59 = vector.broadcast %cst_25 : f32 to vector<16x128xf32>
    %60 = arith.subf %59, %58 : vector<16x128xf32>
    %c112_i32 = arith.constant 112 : i32
    %61 = tpu.dynamic_rotate %0 by %c112_i32 dim 1 : vector<16x128xf32>, i32 -> vector<16x128xf32>
    %cst_26 = arith.constant 5.000000e-01 : f32
    %62 = vector.broadcast %cst_26 : f32 to vector<16x128xf32>
    %63 = arith.mulf %62, %60 : vector<16x128xf32>
    %64 = math.exp %63 : vector<16x128xf32>
    %65 = arith.mulf %61, %64 : vector<16x128xf32>
    %66 = arith.addf %65, %49 : vector<16x128xf32>
    %c144 = arith.constant 144 : index
    %c0_27 = arith.constant 0 : index
    %67 = vector.load %arg2[%c144, %c0_27] : memref<280x128xf32, #tpu.memory_space<vmem>>, vector<8x128xf32>
    %c152 = arith.constant 152 : index
    %c0_28 = arith.constant 0 : index
    %68 = vector.load %arg2[%c152, %c0_28] : memref<280x128xf32, #tpu.memory_space<vmem>>, vector<1x128xf32>
    %69 = vector.extract_strided_slice %66 {offsets = [0, 0], sizes = [16, 8], strides = [1, 1]} : vector<16x128xf32> to vector<16x8xf32>
    %cst_29 = arith.constant dense<0.000000e+00> : vector<16x128xf32>
    %70 = tpu.matmul %69, %67, %cst_29 {dimension_numbers = #tpu.dot_dimension_numbers<[1], [0], [0], [1], [0, 0, 1, 1], [], []>} : vector<16x8xf32>, vector<8x128xf32>, vector<16x128xf32> -> vector<16x128xf32>
    %71 = vector.broadcast %68 : vector<1x128xf32> to vector<16x128xf32>
    %72 = arith.addf %70, %71 : vector<16x128xf32>
    %cst_30 = arith.constant 0.000000e+00 : f32
    %73 = vector.broadcast %cst_30 : f32 to vector<16x128xf32>
    %74 = arith.cmpf ogt, %72, %73 : vector<16x128xf32>
    %cst_31 = arith.constant 0.000000e+00 : f32
    %75 = vector.broadcast %cst_31 : f32 to vector<16x128xf32>
    %76 = arith.minimumf %72, %75 : vector<16x128xf32>
    %77 = math.exp %76 : vector<16x128xf32>
    %cst_32 = arith.constant 1.000000e+00 : f32
    %78 = vector.broadcast %cst_32 : f32 to vector<16x128xf32>
    %79 = arith.subf %77, %78 : vector<16x128xf32>
    %80 = arith.select %74, %72, %79 : vector<16x128xi1>, vector<16x128xf32>
    %c160 = arith.constant 160 : index
    %c0_33 = arith.constant 0 : index
    %81 = vector.load %arg2[%c160, %c0_33] : memref<280x128xf32, #tpu.memory_space<vmem>>, vector<32x128xf32>
    %c192 = arith.constant 192 : index
    %c0_34 = arith.constant 0 : index
    %82 = vector.load %arg2[%c192, %c0_34] : memref<280x128xf32, #tpu.memory_space<vmem>>, vector<1x128xf32>
    %83 = vector.extract_strided_slice %80 {offsets = [0, 0], sizes = [16, 32], strides = [1, 1]} : vector<16x128xf32> to vector<16x32xf32>
    %cst_35 = arith.constant dense<0.000000e+00> : vector<16x128xf32>
    %84 = tpu.matmul %83, %81, %cst_35 {dimension_numbers = #tpu.dot_dimension_numbers<[1], [0], [0], [1], [0, 0, 1, 1], [], []>} : vector<16x32xf32>, vector<32x128xf32>, vector<16x128xf32> -> vector<16x128xf32>
    %85 = vector.broadcast %82 : vector<1x128xf32> to vector<16x128xf32>
    %86 = arith.addf %84, %85 : vector<16x128xf32>
    %cst_36 = arith.constant 0.000000e+00 : f32
    %87 = vector.broadcast %cst_36 : f32 to vector<16x128xf32>
    %88 = arith.cmpf ogt, %86, %87 : vector<16x128xf32>
    %cst_37 = arith.constant 0.000000e+00 : f32
    %89 = vector.broadcast %cst_37 : f32 to vector<16x128xf32>
    %90 = arith.minimumf %86, %89 : vector<16x128xf32>
    %91 = math.exp %90 : vector<16x128xf32>
    %cst_38 = arith.constant 1.000000e+00 : f32
    %92 = vector.broadcast %cst_38 : f32 to vector<16x128xf32>
    %93 = arith.subf %91, %92 : vector<16x128xf32>
    %94 = arith.select %88, %86, %93 : vector<16x128xi1>, vector<16x128xf32>
    %c200 = arith.constant 200 : index
    %c0_39 = arith.constant 0 : index
    %95 = vector.load %arg2[%c200, %c0_39] : memref<280x128xf32, #tpu.memory_space<vmem>>, vector<32x128xf32>
    %c232 = arith.constant 232 : index
    %c0_40 = arith.constant 0 : index
    %96 = vector.load %arg2[%c232, %c0_40] : memref<280x128xf32, #tpu.memory_space<vmem>>, vector<1x128xf32>
    %97 = vector.extract_strided_slice %94 {offsets = [0, 0], sizes = [16, 32], strides = [1, 1]} : vector<16x128xf32> to vector<16x32xf32>
    %cst_41 = arith.constant dense<0.000000e+00> : vector<16x128xf32>
    %98 = tpu.matmul %97, %95, %cst_41 {dimension_numbers = #tpu.dot_dimension_numbers<[1], [0], [0], [1], [0, 0, 1, 1], [], []>} : vector<16x32xf32>, vector<32x128xf32>, vector<16x128xf32> -> vector<16x128xf32>
    %99 = vector.broadcast %96 : vector<1x128xf32> to vector<16x128xf32>
    %100 = arith.addf %98, %99 : vector<16x128xf32>
    %cst_42 = arith.constant 0.000000e+00 : f32
    %101 = vector.broadcast %cst_42 : f32 to vector<16x128xf32>
    %102 = arith.cmpf ogt, %100, %101 : vector<16x128xf32>
    %cst_43 = arith.constant 0.000000e+00 : f32
    %103 = vector.broadcast %cst_43 : f32 to vector<16x128xf32>
    %104 = arith.minimumf %100, %103 : vector<16x128xf32>
    %105 = math.exp %104 : vector<16x128xf32>
    %cst_44 = arith.constant 1.000000e+00 : f32
    %106 = vector.broadcast %cst_44 : f32 to vector<16x128xf32>
    %107 = arith.subf %105, %106 : vector<16x128xf32>
    %108 = arith.select %102, %100, %107 : vector<16x128xi1>, vector<16x128xf32>
    %c240 = arith.constant 240 : index
    %c0_45 = arith.constant 0 : index
    %109 = vector.load %arg2[%c240, %c0_45] : memref<280x128xf32, #tpu.memory_space<vmem>>, vector<32x128xf32>
    %c272 = arith.constant 272 : index
    %c0_46 = arith.constant 0 : index
    %110 = vector.load %arg2[%c272, %c0_46] : memref<280x128xf32, #tpu.memory_space<vmem>>, vector<1x128xf32>
    %111 = vector.extract_strided_slice %108 {offsets = [0, 0], sizes = [16, 32], strides = [1, 1]} : vector<16x128xf32> to vector<16x32xf32>
    %cst_47 = arith.constant dense<0.000000e+00> : vector<16x128xf32>
    %112 = tpu.matmul %111, %109, %cst_47 {dimension_numbers = #tpu.dot_dimension_numbers<[1], [0], [0], [1], [0, 0, 1, 1], [], []>} : vector<16x32xf32>, vector<32x128xf32>, vector<16x128xf32> -> vector<16x128xf32>
    %113 = vector.broadcast %110 : vector<1x128xf32> to vector<16x128xf32>
    %114 = arith.addf %112, %113 : vector<16x128xf32>
    %c116_i32 = arith.constant 116 : i32
    %115 = tpu.dynamic_rotate %114 by %c116_i32 dim 1 : vector<16x128xf32>, i32 -> vector<16x128xf32>
    %cst_48 = arith.constant 0.000000e+00 : f32
    %116 = vector.broadcast %cst_48 : f32 to vector<16x128xf32>
    %117 = arith.cmpf ogt, %115, %116 : vector<16x128xf32>
    %cst_49 = arith.constant 0.000000e+00 : f32
    %118 = vector.broadcast %cst_49 : f32 to vector<16x128xf32>
    %119 = arith.minimumf %115, %118 : vector<16x128xf32>
    %120 = math.exp %119 : vector<16x128xf32>
    %cst_50 = arith.constant 1.000000e+00 : f32
    %121 = vector.broadcast %cst_50 : f32 to vector<16x128xf32>
    %122 = arith.subf %120, %121 : vector<16x128xf32>
    %123 = arith.select %117, %115, %122 : vector<16x128xi1>, vector<16x128xf32>
    %cst_51 = arith.constant 0.000000e+00 : f32
    %124 = vector.broadcast %cst_51 : f32 to vector<16x128xf32>
    %125 = arith.subf %124, %123 : vector<16x128xf32>
    %c12_i32 = arith.constant 12 : i32
    %126 = vector.broadcast %c12_i32 : i32 to vector<16x128xi32>
    %127 = arith.cmpi slt, %1, %126 : vector<16x128xi32>
    %cst_52 = arith.constant 0.000000e+00 : f32
    %128 = vector.broadcast %cst_52 : f32 to vector<16x128xf32>
    %129 = arith.select %127, %125, %128 : vector<16x128xi1>, vector<16x128xf32>
    %cst_53 = arith.constant -5.000000e-01 : f32
    %130 = vector.broadcast %cst_53 : f32 to vector<16x128xf32>
    %131 = arith.mulf %130, %129 : vector<16x128xf32>
    %132 = math.exp %131 : vector<16x128xf32>
    %133 = arith.subf %0, %114 : vector<16x128xf32>
    %cst_54 = arith.constant 0.000000e+00 : f32
    %134 = vector.broadcast %cst_54 : f32 to vector<16x128xf32>
    %135 = arith.mulf %133, %132 : vector<16x128xf32>
    %c0_i32 = arith.constant 0 : i32
    %136 = vector.broadcast %c0_i32 : i32 to vector<16x128xi32>
    %137 = arith.cmpi eq, %1, %136 : vector<16x128xi32>
    %138 = arith.select %137, %135, %134 : vector<16x128xi1>, vector<16x128xf32>
    %c104_i32 = arith.constant 104 : i32
    %139 = tpu.dynamic_rotate %114 by %c104_i32 dim 1 : vector<16x128xf32>, i32 -> vector<16x128xf32>
    %140 = arith.mulf %139, %138 : vector<16x128xf32>
    %cst_55 = arith.constant dense<0.000000e+00> : vector<16xf32>
    %141 = vector.multi_reduction <add>, %140, %cst_55 [1] : vector<16x128xf32> to vector<16xf32>
    %142 = vector.shape_cast %141 : vector<16xf32> to vector<16x1xf32>
    %143 = vector.broadcast %142 : vector<16x1xf32> to vector<16x128xf32>
    %144 = arith.subf %133, %143 : vector<16x128xf32>
    %145 = arith.mulf %144, %132 : vector<16x128xf32>
    %c1_i32 = arith.constant 1 : i32
    %146 = vector.broadcast %c1_i32 : i32 to vector<16x128xi32>
    %147 = arith.cmpi eq, %1, %146 : vector<16x128xi32>
    %148 = arith.select %147, %145, %138 : vector<16x128xi1>, vector<16x128xf32>
    %c103_i32 = arith.constant 103 : i32
    %149 = tpu.dynamic_rotate %114 by %c103_i32 dim 1 : vector<16x128xf32>, i32 -> vector<16x128xf32>
    %150 = arith.mulf %149, %148 : vector<16x128xf32>
    %cst_56 = arith.constant dense<0.000000e+00> : vector<16xf32>
    %151 = vector.multi_reduction <add>, %150, %cst_56 [1] : vector<16x128xf32> to vector<16xf32>
    %152 = vector.shape_cast %151 : vector<16xf32> to vector<16x1xf32>
    %153 = vector.broadcast %152 : vector<16x1xf32> to vector<16x128xf32>
    %154 = arith.subf %133, %153 : vector<16x128xf32>
    %155 = arith.mulf %154, %132 : vector<16x128xf32>
    %c2_i32 = arith.constant 2 : i32
    %156 = vector.broadcast %c2_i32 : i32 to vector<16x128xi32>
    %157 = arith.cmpi eq, %1, %156 : vector<16x128xi32>
    %158 = arith.select %157, %155, %148 : vector<16x128xi1>, vector<16x128xf32>
    %c101_i32 = arith.constant 101 : i32
    %159 = tpu.dynamic_rotate %114 by %c101_i32 dim 1 : vector<16x128xf32>, i32 -> vector<16x128xf32>
    %160 = arith.mulf %159, %158 : vector<16x128xf32>
    %cst_57 = arith.constant dense<0.000000e+00> : vector<16xf32>
    %161 = vector.multi_reduction <add>, %160, %cst_57 [1] : vector<16x128xf32> to vector<16xf32>
    %162 = vector.shape_cast %161 : vector<16xf32> to vector<16x1xf32>
    %163 = vector.broadcast %162 : vector<16x1xf32> to vector<16x128xf32>
    %164 = arith.subf %133, %163 : vector<16x128xf32>
    %165 = arith.mulf %164, %132 : vector<16x128xf32>
    %c3_i32 = arith.constant 3 : i32
    %166 = vector.broadcast %c3_i32 : i32 to vector<16x128xi32>
    %167 = arith.cmpi eq, %1, %166 : vector<16x128xi32>
    %168 = arith.select %167, %165, %158 : vector<16x128xi1>, vector<16x128xf32>
    %c98_i32 = arith.constant 98 : i32
    %169 = tpu.dynamic_rotate %114 by %c98_i32 dim 1 : vector<16x128xf32>, i32 -> vector<16x128xf32>
    %170 = arith.mulf %169, %168 : vector<16x128xf32>
    %cst_58 = arith.constant dense<0.000000e+00> : vector<16xf32>
    %171 = vector.multi_reduction <add>, %170, %cst_58 [1] : vector<16x128xf32> to vector<16xf32>
    %172 = vector.shape_cast %171 : vector<16xf32> to vector<16x1xf32>
    %173 = vector.broadcast %172 : vector<16x1xf32> to vector<16x128xf32>
    %174 = arith.subf %133, %173 : vector<16x128xf32>
    %175 = arith.mulf %174, %132 : vector<16x128xf32>
    %c4_i32 = arith.constant 4 : i32
    %176 = vector.broadcast %c4_i32 : i32 to vector<16x128xi32>
    %177 = arith.cmpi eq, %1, %176 : vector<16x128xi32>
    %178 = arith.select %177, %175, %168 : vector<16x128xi1>, vector<16x128xf32>
    %c94_i32 = arith.constant 94 : i32
    %179 = tpu.dynamic_rotate %114 by %c94_i32 dim 1 : vector<16x128xf32>, i32 -> vector<16x128xf32>
    %180 = arith.mulf %179, %178 : vector<16x128xf32>
    %cst_59 = arith.constant dense<0.000000e+00> : vector<16xf32>
    %181 = vector.multi_reduction <add>, %180, %cst_59 [1] : vector<16x128xf32> to vector<16xf32>
    %182 = vector.shape_cast %181 : vector<16xf32> to vector<16x1xf32>
    %183 = vector.broadcast %182 : vector<16x1xf32> to vector<16x128xf32>
    %184 = arith.subf %133, %183 : vector<16x128xf32>
    %185 = arith.mulf %184, %132 : vector<16x128xf32>
    %c5_i32 = arith.constant 5 : i32
    %186 = vector.broadcast %c5_i32 : i32 to vector<16x128xi32>
    %187 = arith.cmpi eq, %1, %186 : vector<16x128xi32>
    %188 = arith.select %187, %185, %178 : vector<16x128xi1>, vector<16x128xf32>
    %c89_i32 = arith.constant 89 : i32
    %189 = tpu.dynamic_rotate %114 by %c89_i32 dim 1 : vector<16x128xf32>, i32 -> vector<16x128xf32>
    %190 = arith.mulf %189, %188 : vector<16x128xf32>
    %cst_60 = arith.constant dense<0.000000e+00> : vector<16xf32>
    %191 = vector.multi_reduction <add>, %190, %cst_60 [1] : vector<16x128xf32> to vector<16xf32>
    %192 = vector.shape_cast %191 : vector<16xf32> to vector<16x1xf32>
    %193 = vector.broadcast %192 : vector<16x1xf32> to vector<16x128xf32>
    %194 = arith.subf %133, %193 : vector<16x128xf32>
    %195 = arith.mulf %194, %132 : vector<16x128xf32>
    %c6_i32 = arith.constant 6 : i32
    %196 = vector.broadcast %c6_i32 : i32 to vector<16x128xi32>
    %197 = arith.cmpi eq, %1, %196 : vector<16x128xi32>
    %198 = arith.select %197, %195, %188 : vector<16x128xi1>, vector<16x128xf32>
    %c83_i32 = arith.constant 83 : i32
    %199 = tpu.dynamic_rotate %114 by %c83_i32 dim 1 : vector<16x128xf32>, i32 -> vector<16x128xf32>
    %200 = arith.mulf %199, %198 : vector<16x128xf32>
    %cst_61 = arith.constant dense<0.000000e+00> : vector<16xf32>
    %201 = vector.multi_reduction <add>, %200, %cst_61 [1] : vector<16x128xf32> to vector<16xf32>
    %202 = vector.shape_cast %201 : vector<16xf32> to vector<16x1xf32>
    %203 = vector.broadcast %202 : vector<16x1xf32> to vector<16x128xf32>
    %204 = arith.subf %133, %203 : vector<16x128xf32>
    %205 = arith.mulf %204, %132 : vector<16x128xf32>
    %c7_i32 = arith.constant 7 : i32
    %206 = vector.broadcast %c7_i32 : i32 to vector<16x128xi32>
    %207 = arith.cmpi eq, %1, %206 : vector<16x128xi32>
    %208 = arith.select %207, %205, %198 : vector<16x128xi1>, vector<16x128xf32>
    %c76_i32 = arith.constant 76 : i32
    %209 = tpu.dynamic_rotate %114 by %c76_i32 dim 1 : vector<16x128xf32>, i32 -> vector<16x128xf32>
    %210 = arith.mulf %209, %208 : vector<16x128xf32>
    %cst_62 = arith.constant dense<0.000000e+00> : vector<16xf32>
    %211 = vector.multi_reduction <add>, %210, %cst_62 [1] : vector<16x128xf32> to vector<16xf32>
    %212 = vector.shape_cast %211 : vector<16xf32> to vector<16x1xf32>
    %213 = vector.broadcast %212 : vector<16x1xf32> to vector<16x128xf32>
    %214 = arith.subf %133, %213 : vector<16x128xf32>
    %215 = arith.mulf %214, %132 : vector<16x128xf32>
    %c8_i32 = arith.constant 8 : i32
    %216 = vector.broadcast %c8_i32 : i32 to vector<16x128xi32>
    %217 = arith.cmpi eq, %1, %216 : vector<16x128xi32>
    %218 = arith.select %217, %215, %208 : vector<16x128xi1>, vector<16x128xf32>
    %c68_i32 = arith.constant 68 : i32
    %219 = tpu.dynamic_rotate %114 by %c68_i32 dim 1 : vector<16x128xf32>, i32 -> vector<16x128xf32>
    %220 = arith.mulf %219, %218 : vector<16x128xf32>
    %cst_63 = arith.constant dense<0.000000e+00> : vector<16xf32>
    %221 = vector.multi_reduction <add>, %220, %cst_63 [1] : vector<16x128xf32> to vector<16xf32>
    %222 = vector.shape_cast %221 : vector<16xf32> to vector<16x1xf32>
    %223 = vector.broadcast %222 : vector<16x1xf32> to vector<16x128xf32>
    %224 = arith.subf %133, %223 : vector<16x128xf32>
    %225 = arith.mulf %224, %132 : vector<16x128xf32>
    %c9_i32 = arith.constant 9 : i32
    %226 = vector.broadcast %c9_i32 : i32 to vector<16x128xi32>
    %227 = arith.cmpi eq, %1, %226 : vector<16x128xi32>
    %228 = arith.select %227, %225, %218 : vector<16x128xi1>, vector<16x128xf32>
    %c59_i32 = arith.constant 59 : i32
    %229 = tpu.dynamic_rotate %114 by %c59_i32 dim 1 : vector<16x128xf32>, i32 -> vector<16x128xf32>
    %230 = arith.mulf %229, %228 : vector<16x128xf32>
    %cst_64 = arith.constant dense<0.000000e+00> : vector<16xf32>
    %231 = vector.multi_reduction <add>, %230, %cst_64 [1] : vector<16x128xf32> to vector<16xf32>
    %232 = vector.shape_cast %231 : vector<16xf32> to vector<16x1xf32>
    %233 = vector.broadcast %232 : vector<16x1xf32> to vector<16x128xf32>
    %234 = arith.subf %133, %233 : vector<16x128xf32>
    %235 = arith.mulf %234, %132 : vector<16x128xf32>
    %c10_i32 = arith.constant 10 : i32
    %236 = vector.broadcast %c10_i32 : i32 to vector<16x128xi32>
    %237 = arith.cmpi eq, %1, %236 : vector<16x128xi32>
    %238 = arith.select %237, %235, %228 : vector<16x128xi1>, vector<16x128xf32>
    %c49_i32 = arith.constant 49 : i32
    %239 = tpu.dynamic_rotate %114 by %c49_i32 dim 1 : vector<16x128xf32>, i32 -> vector<16x128xf32>
    %240 = arith.mulf %239, %238 : vector<16x128xf32>
    %cst_65 = arith.constant dense<0.000000e+00> : vector<16xf32>
    %241 = vector.multi_reduction <add>, %240, %cst_65 [1] : vector<16x128xf32> to vector<16xf32>
    %242 = vector.shape_cast %241 : vector<16xf32> to vector<16x1xf32>
    %243 = vector.broadcast %242 : vector<16x1xf32> to vector<16x128xf32>
    %244 = arith.subf %133, %243 : vector<16x128xf32>
    %245 = arith.mulf %244, %132 : vector<16x128xf32>
    %c11_i32 = arith.constant 11 : i32
    %246 = vector.broadcast %c11_i32 : i32 to vector<16x128xi32>
    %247 = arith.cmpi eq, %1, %246 : vector<16x128xi32>
    %248 = arith.select %247, %245, %238 : vector<16x128xi1>, vector<16x128xf32>
    %249 = arith.mulf %248, %248 : vector<16x128xf32>
    %cst_66 = arith.constant dense<0.000000e+00> : vector<16xf32>
    %250 = vector.multi_reduction <add>, %249, %cst_66 [1] : vector<16x128xf32> to vector<16xf32>
    %251 = vector.shape_cast %250 : vector<16xf32> to vector<16x1xf32>
    %cst_67 = arith.constant dense<0.000000e+00> : vector<16xf32>
    %252 = vector.multi_reduction <add>, %129, %cst_67 [1] : vector<16x128xf32> to vector<16xf32>
    %253 = vector.shape_cast %252 : vector<16xf32> to vector<16x1xf32>
    %cst_68 = arith.constant 5.000000e-01 : f32
    %254 = vector.broadcast %cst_68 : f32 to vector<16x1xf32>
    %255 = arith.mulf %254, %253 : vector<16x1xf32>
    %cst_69 = arith.constant -11.0272627 : f32
    %256 = vector.broadcast %cst_69 : f32 to vector<16x1xf32>
    %257 = arith.subf %256, %255 : vector<16x1xf32>
    %cst_70 = arith.constant 5.000000e-01 : f32
    %258 = vector.broadcast %cst_70 : f32 to vector<16x1xf32>
    %259 = arith.mulf %258, %251 : vector<16x1xf32>
    %260 = arith.subf %257, %259 : vector<16x1xf32>
    %cst_71 = arith.constant -1.000000e+00 : f32
    %261 = vector.broadcast %cst_71 : f32 to vector<16x128xf32>
    %262 = arith.subf %261, %60 : vector<16x128xf32>
    %263 = arith.mulf %49, %49 : vector<16x128xf32>
    %264 = arith.addf %262, %263 : vector<16x128xf32>
    %265 = math.exp %60 : vector<16x128xf32>
    %266 = arith.addf %264, %265 : vector<16x128xf32>
    %c6_i32_72 = arith.constant 6 : i32
    %267 = vector.broadcast %c6_i32_72 : i32 to vector<16x128xi32>
    %268 = arith.cmpi slt, %1, %267 : vector<16x128xi32>
    %cst_73 = arith.constant 0.000000e+00 : f32
    %269 = vector.broadcast %cst_73 : f32 to vector<16x128xf32>
    %270 = arith.select %268, %266, %269 : vector<16x128xi1>, vector<16x128xf32>
    %cst_74 = arith.constant dense<0.000000e+00> : vector<16xf32>
    %271 = vector.multi_reduction <add>, %270, %cst_74 [1] : vector<16x128xf32> to vector<16xf32>
    %272 = vector.shape_cast %271 : vector<16xf32> to vector<16x1xf32>
    %cst_75 = arith.constant dense<0.000000e+00> : vector<1xf32>
    %273 = vector.multi_reduction <add>, %272, %cst_75 [0] : vector<16x1xf32> to vector<1xf32>
    %274 = vector.shape_cast %273 : vector<1xf32> to vector<1x1xf32>
    %cst_76 = arith.constant 0.000000e+00 : f32
    %275 = vector.broadcast %cst_76 : f32 to vector<16x1xf32>
    %276 = arith.subf %275, %260 : vector<16x1xf32>
    %cst_77 = arith.constant dense<0.000000e+00> : vector<1xf32>
    %277 = vector.multi_reduction <add>, %276, %cst_77 [0] : vector<16x1xf32> to vector<1xf32>
    %278 = vector.shape_cast %277 : vector<1xf32> to vector<1x1xf32>
    %cst_78 = arith.constant 5.000000e-01 : f32
    %279 = vector.broadcast %cst_78 : f32 to vector<1x1xf32>
    %280 = arith.mulf %279, %274 : vector<1x1xf32>
    %281 = arith.addf %278, %280 : vector<1x1xf32>
    %cst_79 = arith.constant 6.250000e-02 : f32
    %282 = vector.broadcast %cst_79 : f32 to vector<1x1xf32>
    %283 = arith.mulf %281, %282 : vector<1x1xf32>
    %c0_80 = arith.constant 0 : index
    %c0_81 = arith.constant 0 : index
    %284 = vector.load %arg3[%c0_80, %c0_81] : memref<1x1xf32, #tpu.memory_space<vmem>>, vector<1x1xf32>
    tpu.vector_store %arg3[%c0_80, %c0_81], %283 {strides = array<i32>} : memref<1x1xf32, #tpu.memory_space<vmem>>, vector<1x1xf32>,
    return
  }
  func.func @transform_0(%arg0: i32) -> (i32, i32) {
    %c0_i32 = arith.constant 0 : i32
    %c0_i32_0 = arith.constant 0 : i32
    %c0_i32_1 = arith.constant 0 : i32
    return %c0_i32, %c0_i32_0 : i32, i32
  }
  func.func @transform_1(%arg0: i32) -> (i32, i32) {
    %c0_i32 = arith.constant 0 : i32
    %c0_i32_0 = arith.constant 0 : i32
    %c0_i32_1 = arith.constant 0 : i32
    return %c0_i32, %c0_i32_0 : i32, i32
  }
  func.func @transform_2(%arg0: i32) -> (i32, i32) {
    %c0_i32 = arith.constant 0 : i32
    %c0_i32_0 = arith.constant 0 : i32
    %c0_i32_1 = arith.constant 0 : i32
    return %c0_i32, %c0_i32_0 : i32, i32
  }
}

</mosaic_0001>

<llo_original>
// kernel: tpu_custom_call.1
$region0: #{tpu_custom_call.1}
  #allocation0 [shape = 'u32[]', space=smem, size = 0x4, offset = 0x4, fixed_abs, tag = 'smem constant byte address 0x4 - core index']
  #allocation1 [shape = 'u32[72,128]{1,0:T(1,128)}', space=vmem, size = 0x9000, scoped, tag = 'internal scratch']
  %s0 = inlined_call_operand.hbm [shape: f32[16,128], index: 0, kind: input, shape index: {}]
  %s1 = inlined_call_operand.hbm [shape: f32[280,128], index: 1, kind: input, shape index: {}]
  %s2 = inlined_call_operand.hbm [shape: f32[1,1], index: 2, kind: output, shape index: {}]
  %s3 = sld [smem:[#allocation0]]
  $region26: #{tpu_custom_call.1} parent=0
    _
  %s5 = ssub.s32 1, %s3
  %s6 = scalar_select 0, %s5, %s3
  $region1: #{tpu_custom_call.1} parent=0
    #allocation2 [shape = 'u8[8192]{0}', space=vmem, size = 0x2000, scoped, tag = 'input window, operand 0, single buffered']
    #allocation3 [shape = 's32[1]{0}', space=sflag, size = 0x4, scoped, tag = 'scoped memory for tpu_custom_call.1']
    #allocation4 [shape = 's32[1]{0}', space=sflag, size = 0x4, scoped, tag = 'scoped memory for tpu_custom_call.1']
    #allocation5 [shape = 'u8[143360]{0}', space=vmem, size = 0x23000, scoped, tag = 'input window, operand 1, single buffered']
    #allocation6 [shape = 's32[1]{0}', space=sflag, size = 0x4, scoped, tag = 'scoped memory for tpu_custom_call.1']
    #allocation7 [shape = 'u8[512]{0}', space=vmem, size = 0x400, scoped, tag = 'output window, operand 0, single buffered']
    %7 = vsyncpa [#allocation3], 0
    %8 = vsyncpa [#allocation6], 0
    %9 = vsyncpa [#allocation4], 0
    // Predicated region
    $region2: #{tpu_custom_call.1} parent=1 // pred_check
      _
    $region3: #{tpu_custom_call.1} parent=1 // pred_check_branch
      %11 = sbr.rel (0) target = $region5
    $region4: #{tpu_custom_call.1} parent=1 // pred_region
      %13 = vsyncadd [#allocation3], 0
      %s14 = sshll.u32 %s0, 4
      %s15 = int_to_ptr.hbm [resolvable:$true] %s14
      %s16 = sshll.u32 [#allocation2], 4
      %s17 = int_to_ptr.vmem [resolvable:$true] %s16
      %22 = dma.hbm_to_vmem [thread:$0]  %s15, 256, %s17, [#allocation3], 128, 128, 8
    $region5: #{tpu_custom_call.1} parent=1 // pred_fallthru
      _
    // Predicated region
    $region6: #{tpu_custom_call.1} parent=1 // pred_check
      _
    $region7: #{tpu_custom_call.1} parent=1 // pred_check_branch
      %24 = sbr.rel (0) target = $region9
    $region8: #{tpu_custom_call.1} parent=1 // pred_region
      %26 = vsyncadd [#allocation6], 0
      %s27 = sshll.u32 %s1, 4
      %s28 = int_to_ptr.hbm [resolvable:$true] %s27
      %s29 = sshll.u32 [#allocation5], 4
      %s30 = int_to_ptr.vmem [resolvable:$true] %s29
      %35 = dma.hbm_to_vmem [thread:$0]  %s28, 4480, %s30, [#allocation6], 128, 128, 8
    $region9: #{tpu_custom_call.1} parent=1 // pred_fallthru
      _
    // Predicated region
    $region10: #{tpu_custom_call.1} parent=1 // pred_check
      _
    $region11: #{tpu_custom_call.1} parent=1 // pred_check_branch
      %37 = sbr.rel (0) target = $region13
    $region12: #{tpu_custom_call.1} parent=1 // pred_region
      %39 = dma.done [#allocation3], 256
    $region13: #{tpu_custom_call.1} parent=1 // pred_fallthru
      _
    // Predicated region
    $region14: #{tpu_custom_call.1} parent=1 // pred_check
      _
    $region15: #{tpu_custom_call.1} parent=1 // pred_check_branch
      %41 = sbr.rel (0) target = $region17
    $region16: #{tpu_custom_call.1} parent=1 // pred_region
      %43 = dma.done [#allocation6], 4480
    $region17: #{tpu_custom_call.1} parent=1 // pred_fallthru
      _
    %v44 = vld [vmem:[#allocation2] sm:$0xff]
    %v45 = vld [vmem:[#allocation2 + $0x8] sm:$0xff]
    %v46 = vlaneseq
    %v47 = vand.u32 %v46, 127
    %v48 = vld [vmem:[#allocation5] sm:$0xff]
    %v49 = vld [vmem:[#allocation5 + $0x8] sm:$0xff]
    %v50 = vld [vmem:[#allocation5 + $0x10] sm:$0x1]
    %v51 = vperm.slane %v50, 0
    %vm52 = vcmask 130048
    %v54 = vsel %vm52, %v44, 0
    %v57 = vsel %vm52, %v45, 0
    %59 = vmatpush.msra.mxu0 0.0
    %60 = vmatpush.msra.mxu0 0.0
    %61 = vmatpush.msra.mxu0 0.0
    %62 = vmatpush.msra.mxu0 0.0
    %63 = vmatpush.msra.mxu0 0.0
    %64 = vmatpush.msra.mxu0 0.0
    %65 = vmatpush.msra.mxu0 0.0
    %66 = vmatpush.msra.mxu0 0.0
    %67 = vmatpush.msra.mxu0 0.0
    %68 = vmatpush.msra.mxu0 0.0
    %69 = vmatpush.msra.mxu0 0.0
    %70 = vmatpush.msra.mxu0 0.0
    %71 = vmatpush.msra.mxu0 0.0
    %72 = vmatpush.msra.mxu0 0.0
    %73 = vmatpush.msra.mxu0 %v49
    %74 = vmatpush.msra.mxu0 %v48
    %75 = vmatmul.f32.gmra.mxu0 %v54
    %v76 = vpop.f32.mrf.mxu0
    %v77 = vadd.f32 %v51, %v76
    %78 = vmatmul.f32.gmra.mxu0 %v57
    %v79 = vpop.f32.mrf.mxu0
    %v80 = vadd.f32 %v51, %v79
    %81 = vdwg.mxu0
    %vm82 = vcmp.gt.f32.partialorder %v77, 0.0
    %vm83 = vcmp.gt.f32.partialorder %v80, 0.0
    %v84 = vmin.f32 %v77, 0.0
    %v85 = vmin.f32 %v80, 0.0
    %v86 = vmul.f32 %v84, 1.442695
    %v87 = vpow.pop %v86
    %v88 = vmul.f32 %v85, 1.442695
    %v89 = vpow.pop %v88
    %v90 = vsub.f32 %v87, 1.0
    %v91 = vsub.f32 %v89, 1.0
    %v92 = vsel %vm82, %v77, %v90
    %v93 = vsel %vm83, %v80, %v91
    %v94 = vld [vmem:[#allocation5 + $0x18] sm:$0xff]
    %v95 = vld [vmem:[#allocation5 + $0x20] sm:$0xff]
    %v96 = vld [vmem:[#allocation5 + $0x28] sm:$0xff]
    %v97 = vld [vmem:[#allocation5 + $0x30] sm:$0xff]
    %v98 = vld [vmem:[#allocation5 + $0x38] sm:$0x1]
    %v99 = vperm.slane %v98, 0
    %vm100 = vcmask 261120
    %v102 = vsel %vm100, %v92, 0
    %v105 = vsel %vm100, %v93, 0
    %107 = vmatpush.msra.mxu0 0.0
    %108 = vmatpush.msra.mxu0 0.0
    %109 = vmatpush.msra.mxu0 0.0
    %110 = vmatpush.msra.mxu0 0.0
    %111 = vmatpush.msra.mxu0 0.0
    %112 = vmatpush.msra.mxu0 0.0
    %113 = vmatpush.msra.mxu0 0.0
    %114 = vmatpush.msra.mxu0 0.0
    %115 = vmatpush.msra.mxu0 0.0
    %116 = vmatpush.msra.mxu0 0.0
    %117 = vmatpush.msra.mxu0 0.0
    %118 = vmatpush.msra.mxu0 0.0
    %119 = vmatpush.msra.mxu0 %v97
    %120 = vmatpush.msra.mxu0 %v96
    %121 = vmatpush.msra.mxu0 %v95
    %122 = vmatpush.msra.mxu0 %v94
    %123 = vmatmul.f32.gmra.mxu0 %v102
    %v124 = vpop.f32.mrf.mxu0
    %v125 = vadd.f32 %v99, %v124
    %126 = vmatmul.f32.gmra.mxu0 %v105
    %v127 = vpop.f32.mrf.mxu0
    %v128 = vadd.f32 %v99, %v127
    %129 = vdwg.mxu0
    %vm130 = vcmp.gt.f32.partialorder %v125, 0.0
    %vm131 = vcmp.gt.f32.partialorder %v128, 0.0
    %v132 = vmin.f32 %v125, 0.0
    %v133 = vmin.f32 %v128, 0.0
    %v134 = vmul.f32 %v132, 1.442695
    %v135 = vpow.pop %v134
    %v136 = vmul.f32 %v133, 1.442695
    %v137 = vpow.pop %v136
    %v138 = vsub.f32 %v135, 1.0
    %v139 = vsub.f32 %v137, 1.0
    %v140 = vsel %vm130, %v125, %v138
    %v141 = vsel %vm131, %v128, %v139
    %v142 = vld [vmem:[#allocation5 + $0x40] sm:$0xff]
    %v143 = vld [vmem:[#allocation5 + $0x48] sm:$0xff]
    %v144 = vld [vmem:[#allocation5 + $0x50] sm:$0xff]
    %v145 = vld [vmem:[#allocation5 + $0x58] sm:$0xff]
    %v146 = vld [vmem:[#allocation5 + $0x60] sm:$0x1]
    %v147 = vperm.slane %v146, 0
    %v149 = vsel %vm100, %v140, 0
    %v152 = vsel %vm100, %v141, 0
    %154 = vmatpush.msra.mxu0 0.0
    %155 = vmatpush.msra.mxu0 0.0
    %156 = vmatpush.msra.mxu0 0.0
    %157 = vmatpush.msra.mxu0 0.0
    %158 = vmatpush.msra.mxu0 0.0
    %159 = vmatpush.msra.mxu0 0.0
    %160 = vmatpush.msra.mxu0 0.0
    %161 = vmatpush.msra.mxu0 0.0
    %162 = vmatpush.msra.mxu0 0.0
    %163 = vmatpush.msra.mxu0 0.0
    %164 = vmatpush.msra.mxu0 0.0
    %165 = vmatpush.msra.mxu0 0.0
    %166 = vmatpush.msra.mxu0 %v145
    %167 = vmatpush.msra.mxu0 %v144
    %168 = vmatpush.msra.mxu0 %v143
    %169 = vmatpush.msra.mxu0 %v142
    %170 = vmatmul.f32.gmra.mxu0 %v149
    %v171 = vpop.f32.mrf.mxu0
    %v172 = vadd.f32 %v147, %v171
    %173 = vmatmul.f32.gmra.mxu0 %v152
    %v174 = vpop.f32.mrf.mxu0
    %v175 = vadd.f32 %v147, %v174
    %176 = vdwg.mxu0
    %vm177 = vcmp.gt.f32.partialorder %v172, 0.0
    %vm178 = vcmp.gt.f32.partialorder %v175, 0.0
    %v179 = vmin.f32 %v172, 0.0
    %v180 = vmin.f32 %v175, 0.0
    %v181 = vmul.f32 %v179, 1.442695
    %v182 = vpow.pop %v181
    %v183 = vmul.f32 %v180, 1.442695
    %v184 = vpow.pop %v183
    %v185 = vsub.f32 %v182, 1.0
    %v186 = vsub.f32 %v184, 1.0
    %v187 = vsel %vm177, %v172, %v185
    %v188 = vsel %vm178, %v175, %v186
    %v189 = vld [vmem:[#allocation5 + $0x68] sm:$0xff]
    %v190 = vld [vmem:[#allocation5 + $0x70] sm:$0xff]
    %v191 = vld [vmem:[#allocation5 + $0x78] sm:$0xff]
    %v192 = vld [vmem:[#allocation5 + $0x80] sm:$0xff]
    %v193 = vld [vmem:[#allocation5 + $0x88] sm:$0x1]
    %v194 = vperm.slane %v193, 0
    %v196 = vsel %vm100, %v187, 0
    %v199 = vsel %vm100, %v188, 0
    %201 = vmatpush.msra.mxu0 0.0
    %202 = vmatpush.msra.mxu0 0.0
    %203 = vmatpush.msra.mxu0 0.0
    %204 = vmatpush.msra.mxu0 0.0
    %205 = vmatpush.msra.mxu0 0.0
    %206 = vmatpush.msra.mxu0 0.0
    %207 = vmatpush.msra.mxu0 0.0
    %208 = vmatpush.msra.mxu0 0.0
    %209 = vmatpush.msra.mxu0 0.0
    %210 = vmatpush.msra.mxu0 0.0
    %211 = vmatpush.msra.mxu0 0.0
    %212 = vmatpush.msra.mxu0 0.0
    %213 = vmatpush.msra.mxu0 %v192
    %214 = vmatpush.msra.mxu0 %v191
    %215 = vmatpush.msra.mxu0 %v190
    %216 = vmatpush.msra.mxu0 %v189
    %217 = vmatmul.f32.gmra.mxu0 %v196
    %v218 = vpop.f32.mrf.mxu0
    %v219 = vadd.f32 %v194, %v218
    %220 = vmatmul.f32.gmra.mxu0 %v199
    %v221 = vpop.f32.mrf.mxu0
    %v222 = vadd.f32 %v194, %v221
    %223 = vdwg.mxu0
    %224 = vrot.lane.b32.xlu0 %v219, 122
    %v225 = vpop.permute.xlu0 %224
    %226 = vrot.lane.b32.xlu0 %v222, 122
    %v227 = vpop.permute.xlu0 %226
    %vm228 = vcmp.gt.f32.partialorder %v225, 0.0
    %vm229 = vcmp.gt.f32.partialorder %v227, 0.0
    %v230 = vmin.f32 %v225, 0.0
    %v231 = vmin.f32 %v227, 0.0
    %v232 = vmul.f32 %v230, 1.442695
    %v233 = vpow.pop %v232
    %v234 = vmul.f32 %v231, 1.442695
    %v235 = vpow.pop %v234
    %v236 = vsub.f32 %v233, 1.0
    %v237 = vsub.f32 %v235, 1.0
    %v238 = vsel %vm228, %v225, %v236
    %v239 = vsel %vm229, %v227, %v237
    %v240 = vsub.f32 0.0, %v238
    %v241 = vsub.f32 0.0, %v239
    %242 = vrot.lane.b32.xlu0 %v44, 112
    %v243 = vpop.permute.xlu0 %242
    %244 = vrot.lane.b32.xlu0 %v45, 112
    %v245 = vpop.permute.xlu0 %244
    %v246 = vmul.f32 %v240, 0.5
    %v247 = vmul.f32 %v241, 0.5
    %v248 = vmul.f32 %v246, 1.442695
    %v249 = vpow.pop %v248
    %v250 = vmul.f32 %v247, 1.442695
    %v251 = vpow.pop %v250
    %v252 = vmul.f32 %v243, %v249
    %v253 = vmul.f32 %v245, %v251
    %v254 = vadd.f32 %v252, %v219
    %v255 = vadd.f32 %v253, %v222
    %v256 = vld [vmem:[#allocation5 + $0x90] sm:$0xff]
    %v257 = vld [vmem:[#allocation5 + $0x98] sm:$0x1]
    %v258 = vperm.slane %v257, 0
    %vm259 = vcmask 64512
    %v261 = vsel %vm259, %v254, 0
    %v264 = vsel %vm259, %v255, 0
    %266 = vmatpush.msra.mxu0 0.0
    %267 = vmatpush.msra.mxu0 0.0
    %268 = vmatpush.msra.mxu0 0.0
    %269 = vmatpush.msra.mxu0 0.0
    %270 = vmatpush.msra.mxu0 0.0
    %271 = vmatpush.msra.mxu0 0.0
    %272 = vmatpush.msra.mxu0 0.0
    %273 = vmatpush.msra.mxu0 0.0
    %274 = vmatpush.msra.mxu0 0.0
    %275 = vmatpush.msra.mxu0 0.0
    %276 = vmatpush.msra.mxu0 0.0
    %277 = vmatpush.msra.mxu0 0.0
    %278 = vmatpush.msra.mxu0 0.0
    %279 = vmatpush.msra.mxu0 0.0
    %280 = vmatpush.msra.mxu0 0.0
    %281 = vmatpush.msra.mxu0 %v256
    %282 = vmatmul.f32.gmra.mxu0 %v261
    %v283 = vpop.f32.mrf.mxu0
    %v284 = vadd.f32 %v258, %v283
    %285 = vmatmul.f32.gmra.mxu0 %v264
    %v286 = vpop.f32.mrf.mxu0
    %v287 = vadd.f32 %v258, %v286
    %288 = vdwg.mxu0
    %vm289 = vcmp.gt.f32.partialorder %v284, 0.0
    %vm290 = vcmp.gt.f32.partialorder %v287, 0.0
    %v291 = vmin.f32 %v284, 0.0
    %v292 = vmin.f32 %v287, 0.0
    %v293 = vmul.f32 %v291, 1.442695
    %v294 = vpow.pop %v293
    %v295 = vmul.f32 %v292, 1.442695
    %v296 = vpow.pop %v295
    %v297 = vsub.f32 %v294, 1.0
    %v298 = vsub.f32 %v296, 1.0
    %v299 = vsel %vm289, %v284, %v297
    %v300 = vsel %vm290, %v287, %v298
    %v301 = vld [vmem:[#allocation5 + $0xa0] sm:$0xff]
    %v302 = vld [vmem:[#allocation5 + $0xa8] sm:$0xff]
    %v303 = vld [vmem:[#allocation5 + $0xb0] sm:$0xff]
    %v304 = vld [vmem:[#allocation5 + $0xb8] sm:$0xff]
    %v305 = vld [vmem:[#allocation5 + $0xc0] sm:$0x1]
    %v306 = vperm.slane %v305, 0
    %v308 = vsel %vm100, %v299, 0
    %v311 = vsel %vm100, %v300, 0
    %313 = vmatpush.msra.mxu0 0.0
    %314 = vmatpush.msra.mxu0 0.0
    %315 = vmatpush.msra.mxu0 0.0
    %316 = vmatpush.msra.mxu0 0.0
    %317 = vmatpush.msra.mxu0 0.0
    %318 = vmatpush.msra.mxu0 0.0
    %319 = vmatpush.msra.mxu0 0.0
    %320 = vmatpush.msra.mxu0 0.0
    %321 = vmatpush.msra.mxu0 0.0
    %322 = vmatpush.msra.mxu0 0.0
    %323 = vmatpush.msra.mxu0 0.0
    %324 = vmatpush.msra.mxu0 0.0
    %325 = vmatpush.msra.mxu0 %v304
    %326 = vmatpush.msra.mxu0 %v303
    %327 = vmatpush.msra.mxu0 %v302
    %328 = vmatpush.msra.mxu0 %v301
    %329 = vmatmul.f32.gmra.mxu0 %v308
    %v330 = vpop.f32.mrf.mxu0
    %v331 = vadd.f32 %v306, %v330
    %332 = vmatmul.f32.gmra.mxu0 %v311
    %v333 = vpop.f32.mrf.mxu0
    %v334 = vadd.f32 %v306, %v333
    %335 = vdwg.mxu0
    %vm336 = vcmp.gt.f32.partialorder %v331, 0.0
    %vm337 = vcmp.gt.f32.partialorder %v334, 0.0
    %v338 = vmin.f32 %v331, 0.0
    %v339 = vmin.f32 %v334, 0.0
    %v340 = vmul.f32 %v338, 1.442695
    %v341 = vpow.pop %v340
    %v342 = vmul.f32 %v339, 1.442695
    %v343 = vpow.pop %v342
    %v344 = vsub.f32 %v341, 1.0
    %v345 = vsub.f32 %v343, 1.0
    %v346 = vsel %vm336, %v331, %v344
    %v347 = vsel %vm337, %v334, %v345
    %v348 = vld [vmem:[#allocation5 + $0xc8] sm:$0xff]
    %v349 = vld [vmem:[#allocation5 + $0xd0] sm:$0xff]
    %v350 = vld [vmem:[#allocation5 + $0xd8] sm:$0xff]
    %v351 = vld [vmem:[#allocation5 + $0xe0] sm:$0xff]
    %v352 = vld [vmem:[#allocation5 + $0xe8] sm:$0x1]
    %v353 = vperm.slane %v352, 0
    %v355 = vsel %vm100, %v346, 0
    %v358 = vsel %vm100, %v347, 0
    %360 = vmatpush.msra.mxu0 0.0
    %361 = vmatpush.msra.mxu0 0.0
    %362 = vmatpush.msra.mxu0 0.0
    %363 = vmatpush.msra.mxu0 0.0
    %364 = vmatpush.msra.mxu0 0.0
    %365 = vmatpush.msra.mxu0 0.0
    %366 = vmatpush.msra.mxu0 0.0
    %367 = vmatpush.msra.mxu0 0.0
    %368 = vmatpush.msra.mxu0 0.0
    %369 = vmatpush.msra.mxu0 0.0
    %370 = vmatpush.msra.mxu0 0.0
    %371 = vmatpush.msra.mxu0 0.0
    %372 = vmatpush.msra.mxu0 %v351
    %373 = vmatpush.msra.mxu0 %v350
    %374 = vmatpush.msra.mxu0 %v349
    %375 = vmatpush.msra.mxu0 %v348
    %376 = vmatmul.f32.gmra.mxu0 %v355
    %v377 = vpop.f32.mrf.mxu0
    %v378 = vadd.f32 %v353, %v377
    %379 = vmatmul.f32.gmra.mxu0 %v358
    %v380 = vpop.f32.mrf.mxu0
    %v381 = vadd.f32 %v353, %v380
    %382 = vdwg.mxu0
    %vm383 = vcmp.gt.f32.partialorder %v378, 0.0
    %vm384 = vcmp.gt.f32.partialorder %v381, 0.0
    %v385 = vmin.f32 %v378, 0.0
    %v386 = vmin.f32 %v381, 0.0
    %v387 = vmul.f32 %v385, 1.442695
    %v388 = vpow.pop %v387
    %v389 = vmul.f32 %v386, 1.442695
    %v390 = vpow.pop %v389
    %v391 = vsub.f32 %v388, 1.0
    %v392 = vsub.f32 %v390, 1.0
    %v393 = vsel %vm383, %v378, %v391
    %v394 = vsel %vm384, %v381, %v392
    %v395 = vld [vmem:[#allocation5 + $0xf0] sm:$0xff]
    %v396 = vld [vmem:[#allocation5 + $0xf8] sm:$0xff]
    %v397 = vld [vmem:[#allocation5 + $0x100] sm:$0xff]
    %v398 = vld [vmem:[#allocation5 + $0x108] sm:$0xff]
    %v399 = vld [vmem:[#allocation5 + $0x110] sm:$0x1]
    %v400 = vperm.slane %v399, 0
    %v402 = vsel %vm100, %v393, 0
    %v405 = vsel %vm100, %v394, 0
    %407 = vmatpush.msra.mxu0 0.0
    %408 = vmatpush.msra.mxu0 0.0
    %409 = vmatpush.msra.mxu0 0.0
    %410 = vmatpush.msra.mxu0 0.0
    %411 = vmatpush.msra.mxu0 0.0
    %412 = vmatpush.msra.mxu0 0.0
    %413 = vmatpush.msra.mxu0 0.0
    %414 = vmatpush.msra.mxu0 0.0
    %415 = vmatpush.msra.mxu0 0.0
    %416 = vmatpush.msra.mxu0 0.0
    %417 = vmatpush.msra.mxu0 0.0
    %418 = vmatpush.msra.mxu0 0.0
    %419 = vmatpush.msra.mxu0 %v398
    %420 = vmatpush.msra.mxu0 %v397
    %421 = vmatpush.msra.mxu0 %v396
    %422 = vmatpush.msra.mxu0 %v395
    %423 = vmatmul.f32.gmra.mxu0 %v402
    %v424 = vpop.f32.mrf.mxu0
    %v425 = vadd.f32 %v400, %v424
    %426 = vmatmul.f32.gmra.mxu0 %v405
    %v427 = vpop.f32.mrf.mxu0
    %v428 = vadd.f32 %v400, %v427
    %429 = vdwg.mxu0
    %430 = vrot.lane.b32.xlu0 %v425, 116
    %v431 = vpop.permute.xlu0 %430
    %432 = vrot.lane.b32.xlu0 %v428, 116
    %v433 = vpop.permute.xlu0 %432
    %vm434 = vcmp.gt.f32.partialorder %v431, 0.0
    %vm435 = vcmp.gt.f32.partialorder %v433, 0.0
    %v436 = vmin.f32 %v431, 0.0
    %v437 = vmin.f32 %v433, 0.0
    %v438 = vmul.f32 %v436, 1.442695
    %v439 = vpow.pop %v438
    %v440 = vmul.f32 %v437, 1.442695
    %v441 = vpow.pop %v440
    %v442 = vsub.f32 %v439, 1.0
    %v443 = vsub.f32 %v441, 1.0
    %v444 = vsel %vm434, %v431, %v442
    %v445 = vsel %vm435, %v433, %v443
    %v446 = vsub.f32 0.0, %v444
    %v447 = vsub.f32 0.0, %v445
    %vm448 = vcmp.lt.s32.totalorder %v47, 12
    %v449 = vsel %vm448, %v446, 0.0
    %v450 = vsel %vm448, %v447, 0.0
    %v451 = vmul.f32 %v449, -0.5
    %v452 = vmul.f32 %v450, -0.5
    %v453 = vmul.f32 %v451, 1.442695
    %v454 = vpow.pop %v453
    %v455 = vmul.f32 %v452, 1.442695
    %v456 = vpow.pop %v455
    %v457 = vsub.f32 %v44, %v425
    %v458 = vsub.f32 %v45, %v428
    %v459 = vmul.f32 %v457, %v454
    %v460 = vmul.f32 %v458, %v456
    %vm461 = vcmp.eq.s32.totalorder %v47, 0
    %v462 = vsel %vm461, %v459, 0.0
    %v463 = vsel %vm461, %v460, 0.0
    %464 = vrot.lane.b32.xlu0 %v425, 104
    %v465 = vpop.permute.xlu0 %464
    %466 = vrot.lane.b32.xlu0 %v428, 104
    %v467 = vpop.permute.xlu0 %466
    %v468 = vmul.f32 %v465, %v462
    %v469 = vmul.f32 %v467, %v463
    %470 = vadd.xlane.f32.xlu0 %v468
    %v471 = vpop.xlane.xlu0 %470
    %472 = vadd.xlane.f32.xlu0 %v469
    %v473 = vpop.xlane.xlu0 %472
    %v474 = vsub.f32 %v457, %v471
    %v475 = vsub.f32 %v458, %v473
    %v476 = vmul.f32 %v474, %v454
    %v477 = vmul.f32 %v475, %v456
    %vm478 = vcmp.eq.s32.totalorder %v47, 1
    %v479 = vsel %vm478, %v476, %v462
    %v480 = vsel %vm478, %v477, %v463
    %481 = vrot.lane.b32.xlu0 %v425, 103
    %v482 = vpop.permute.xlu0 %481
    %483 = vrot.lane.b32.xlu0 %v428, 103
    %v484 = vpop.permute.xlu0 %483
    %v485 = vmul.f32 %v482, %v479
    %v486 = vmul.f32 %v484, %v480
    %487 = vadd.xlane.f32.xlu0 %v485
    %v488 = vpop.xlane.xlu0 %487
    %489 = vadd.xlane.f32.xlu0 %v486
    %v490 = vpop.xlane.xlu0 %489
    %v491 = vsub.f32 %v457, %v488
    %v492 = vsub.f32 %v458, %v490
    %v493 = vmul.f32 %v491, %v454
    %v494 = vmul.f32 %v492, %v456
    %vm495 = vcmp.eq.s32.totalorder %v47, 2
    %v496 = vsel %vm495, %v493, %v479
    %v497 = vsel %vm495, %v494, %v480
    %498 = vrot.lane.b32.xlu0 %v425, 101
    %v499 = vpop.permute.xlu0 %498
    %500 = vrot.lane.b32.xlu0 %v428, 101
    %v501 = vpop.permute.xlu0 %500
    %v502 = vmul.f32 %v499, %v496
    %v503 = vmul.f32 %v501, %v497
    %504 = vadd.xlane.f32.xlu0 %v502
    %v505 = vpop.xlane.xlu0 %504
    %506 = vadd.xlane.f32.xlu0 %v503
    %v507 = vpop.xlane.xlu0 %506
    %v508 = vsub.f32 %v457, %v505
    %v509 = vsub.f32 %v458, %v507
    %v510 = vmul.f32 %v508, %v454
    %v511 = vmul.f32 %v509, %v456
    %vm512 = vcmp.eq.s32.totalorder %v47, 3
    %v513 = vsel %vm512, %v510, %v496
    %v514 = vsel %vm512, %v511, %v497
    %515 = vrot.lane.b32.xlu0 %v425, 98
    %v516 = vpop.permute.xlu0 %515
    %517 = vrot.lane.b32.xlu0 %v428, 98
    %v518 = vpop.permute.xlu0 %517
    %v519 = vmul.f32 %v516, %v513
    %v520 = vmul.f32 %v518, %v514
    %521 = vadd.xlane.f32.xlu0 %v519
    %v522 = vpop.xlane.xlu0 %521
    %523 = vadd.xlane.f32.xlu0 %v520
    %v524 = vpop.xlane.xlu0 %523
    %v525 = vsub.f32 %v457, %v522
    %v526 = vsub.f32 %v458, %v524
    %v527 = vmul.f32 %v525, %v454
    %v528 = vmul.f32 %v526, %v456
    %vm529 = vcmp.eq.s32.totalorder %v47, 4
    %v530 = vsel %vm529, %v527, %v513
    %v531 = vsel %vm529, %v528, %v514
    %532 = vrot.lane.b32.xlu0 %v425, 94
    %v533 = vpop.permute.xlu0 %532
    %534 = vrot.lane.b32.xlu0 %v428, 94
    %v535 = vpop.permute.xlu0 %534
    %v536 = vmul.f32 %v533, %v530
    %v537 = vmul.f32 %v535, %v531
    %538 = vadd.xlane.f32.xlu0 %v536
    %v539 = vpop.xlane.xlu0 %538
    %540 = vadd.xlane.f32.xlu0 %v537
    %v541 = vpop.xlane.xlu0 %540
    %v542 = vsub.f32 %v457, %v539
    %v543 = vsub.f32 %v458, %v541
    %v544 = vmul.f32 %v542, %v454
    %v545 = vmul.f32 %v543, %v456
    %vm546 = vcmp.eq.s32.totalorder %v47, 5
    %v547 = vsel %vm546, %v544, %v530
    %v548 = vsel %vm546, %v545, %v531
    %549 = vrot.lane.b32.xlu0 %v425, 89
    %v550 = vpop.permute.xlu0 %549
    %551 = vrot.lane.b32.xlu0 %v428, 89
    %v552 = vpop.permute.xlu0 %551
    %v553 = vmul.f32 %v550, %v547
    %v554 = vmul.f32 %v552, %v548
    %555 = vadd.xlane.f32.xlu0 %v553
    %v556 = vpop.xlane.xlu0 %555
    %557 = vadd.xlane.f32.xlu0 %v554
    %v558 = vpop.xlane.xlu0 %557
    %v559 = vsub.f32 %v457, %v556
    %v560 = vsub.f32 %v458, %v558
    %v561 = vmul.f32 %v559, %v454
    %v562 = vmul.f32 %v560, %v456
    %vm563 = vcmp.eq.s32.totalorder %v47, 6
    %v564 = vsel %vm563, %v561, %v547
    %v565 = vsel %vm563, %v562, %v548
    %566 = vrot.lane.b32.xlu0 %v425, 83
    %v567 = vpop.permute.xlu0 %566
    %568 = vrot.lane.b32.xlu0 %v428, 83
    %v569 = vpop.permute.xlu0 %568
    %v570 = vmul.f32 %v567, %v564
    %v571 = vmul.f32 %v569, %v565
    %572 = vadd.xlane.f32.xlu0 %v570
    %v573 = vpop.xlane.xlu0 %572
    %574 = vadd.xlane.f32.xlu0 %v571
    %v575 = vpop.xlane.xlu0 %574
    %v576 = vsub.f32 %v457, %v573
    %v577 = vsub.f32 %v458, %v575
    %v578 = vmul.f32 %v576, %v454
    %v579 = vmul.f32 %v577, %v456
    %vm580 = vcmp.eq.s32.totalorder %v47, 7
    %v581 = vsel %vm580, %v578, %v564
    %v582 = vsel %vm580, %v579, %v565
    %583 = vrot.lane.b32.xlu0 %v425, 76
    %v584 = vpop.permute.xlu0 %583
    %585 = vrot.lane.b32.xlu0 %v428, 76
    %v586 = vpop.permute.xlu0 %585
    %v587 = vmul.f32 %v584, %v581
    %v588 = vmul.f32 %v586, %v582
    %589 = vadd.xlane.f32.xlu0 %v587
    %v590 = vpop.xlane.xlu0 %589
    %591 = vadd.xlane.f32.xlu0 %v588
    %v592 = vpop.xlane.xlu0 %591
    %v593 = vsub.f32 %v457, %v590
    %v594 = vsub.f32 %v458, %v592
    %v595 = vmul.f32 %v593, %v454
    %v596 = vmul.f32 %v594, %v456
    %vm597 = vcmp.eq.s32.totalorder %v47, 8
    %v598 = vsel %vm597, %v595, %v581
    %v599 = vsel %vm597, %v596, %v582
    %600 = vrot.lane.b32.xlu0 %v425, 68
    %v601 = vpop.permute.xlu0 %600
    %602 = vrot.lane.b32.xlu0 %v428, 68
    %v603 = vpop.permute.xlu0 %602
    %v604 = vmul.f32 %v601, %v598
    %v605 = vmul.f32 %v603, %v599
    %606 = vadd.xlane.f32.xlu0 %v604
    %v607 = vpop.xlane.xlu0 %606
    %608 = vadd.xlane.f32.xlu0 %v605
    %v609 = vpop.xlane.xlu0 %608
    %v610 = vsub.f32 %v457, %v607
    %v611 = vsub.f32 %v458, %v609
    %v612 = vmul.f32 %v610, %v454
    %v613 = vmul.f32 %v611, %v456
    %vm614 = vcmp.eq.s32.totalorder %v47, 9
    %v615 = vsel %vm614, %v612, %v598
    %v616 = vsel %vm614, %v613, %v599
    %617 = vrot.lane.b32.xlu0 %v425, 59
    %v618 = vpop.permute.xlu0 %617
    %619 = vrot.lane.b32.xlu0 %v428, 59
    %v620 = vpop.permute.xlu0 %619
    %v621 = vmul.f32 %v618, %v615
    %v622 = vmul.f32 %v620, %v616
    %623 = vadd.xlane.f32.xlu0 %v621
    %v624 = vpop.xlane.xlu0 %623
    %625 = vadd.xlane.f32.xlu0 %v622
    %v626 = vpop.xlane.xlu0 %625
    %v627 = vsub.f32 %v457, %v624
    %v628 = vsub.f32 %v458, %v626
    %v629 = vmul.f32 %v627, %v454
    %v630 = vmul.f32 %v628, %v456
    %vm631 = vcmp.eq.s32.totalorder %v47, 10
    %v632 = vsel %vm631, %v629, %v615
    %v633 = vsel %vm631, %v630, %v616
    %634 = vrot.lane.b32.xlu0 %v425, 49
    %v635 = vpop.permute.xlu0 %634
    %636 = vrot.lane.b32.xlu0 %v428, 49
    %v637 = vpop.permute.xlu0 %636
    %v638 = vmul.f32 %v635, %v632
    %v639 = vmul.f32 %v637, %v633
    %640 = vadd.xlane.f32.xlu0 %v638
    %v641 = vpop.xlane.xlu0 %640
    %642 = vadd.xlane.f32.xlu0 %v639
    %v643 = vpop.xlane.xlu0 %642
    %v644 = vsub.f32 %v457, %v641
    %v645 = vsub.f32 %v458, %v643
    %v646 = vmul.f32 %v644, %v454
    %v647 = vmul.f32 %v645, %v456
    %vm648 = vcmp.eq.s32.totalorder %v47, 11
    %v649 = vsel %vm648, %v646, %v632
    %v650 = vsel %vm648, %v647, %v633
    %v651 = vmul.f32 %v649, %v649
    %v652 = vmul.f32 %v650, %v650
    %653 = vadd.xlane.f32.xlu0 %v651
    %v654 = vpop.xlane.xlu0 %653
    %655 = vadd.xlane.f32.xlu0 %v652
    %v656 = vpop.xlane.xlu0 %655
    %657 = vadd.xlane.f32.xlu0 %v449
    %v658 = vpop.xlane.xlu0 %657
    %659 = vadd.xlane.f32.xlu0 %v450
    %v660 = vpop.xlane.xlu0 %659
    %v661 = vmul.f32 %v658, 0.5
    %v662 = vmul.f32 %v660, 0.5
    %v663 = vsub.f32 -11.027263, %v661
    %v664 = vsub.f32 -11.027263, %v662
    %v665 = vmul.f32 %v654, 0.5
    %v666 = vmul.f32 %v656, 0.5
    %v667 = vsub.f32 %v663, %v665
    %v668 = vsub.f32 %v664, %v666
    %v669 = vsub.f32 -1.0, %v240
    %v670 = vsub.f32 -1.0, %v241
    %v671 = vmul.f32 %v219, %v219
    %v672 = vmul.f32 %v222, %v222
    %v673 = vadd.f32 %v669, %v671
    %v674 = vadd.f32 %v670, %v672
    %v675 = vmul.f32 %v240, 1.442695
    %v676 = vpow.pop %v675
    %v677 = vmul.f32 %v241, 1.442695
    %v678 = vpow.pop %v677
    %v679 = vadd.f32 %v673, %v676
    %v680 = vadd.f32 %v674, %v678
    %vm681 = vcmp.lt.s32.totalorder %v47, 6
    %v682 = vsel %vm681, %v679, 0.0
    %v683 = vsel %vm681, %v680, 0.0
    %684 = vadd.xlane.f32.xlu0 %v682
    %v685 = vpop.xlane.xlu0 %684
    %686 = vadd.xlane.f32.xlu0 %v683
    %v687 = vpop.xlane.xlu0 %686
    %v688 = vadd.f32 %v685, %v687
    %v689 = vrot.slane %v688, 4
    %v690 = vadd.f32 %v688, %v689
    %v691 = vrot.slane %v690, 2
    %v692 = vadd.f32 %v690, %v691
    %v693 = vrot.slane %v692, 1
    %v694 = vadd.f32 %v692, %v693
    %v695 = vsub.f32 0.0, %v667
    %v696 = vsub.f32 0.0, %v668
    %v697 = vadd.f32 %v695, %v696
    %v698 = vrot.slane %v697, 4
    %v699 = vadd.f32 %v697, %v698
    %v700 = vrot.slane %v699, 2
    %v701 = vadd.f32 %v699, %v700
    %v702 = vrot.slane %v701, 1
    %v703 = vadd.f32 %v701, %v702
    %v704 = vmul.f32 %v694, 0.5
    %v705 = vadd.f32 %v703, %v704
    %v706 = vmul.f32 %v705, 0.0625
    %vm707 = vcmask 0
    %708 = vst.msk [vmem:[#allocation7] sm:$0x1] %vm707, %v706
    // Predicated region
    $region18: #{tpu_custom_call.1} parent=1 // pred_check
      _
    $region19: #{tpu_custom_call.1} parent=1 // pred_check_branch
      %710 = sbr.rel (0) target = $region21
    $region20: #{tpu_custom_call.1} parent=1 // pred_region
      %712 = vsyncadd [#allocation4], 0
      %s714 = sshll.u32 [#allocation7], 4
      %s715 = int_to_ptr.vmem [resolvable:$true] %s714
      %s716 = sshll.u32 %s2, 4
      %s717 = int_to_ptr.hbm [resolvable:$true] %s716
      %719 = dma.vmem_to_hbm [thread:$0]  %s715, 16, %s717, [#allocation4]
    $region21: #{tpu_custom_call.1} parent=1 // pred_fallthru
      _
    // Predicated region
    $region22: #{tpu_custom_call.1} parent=1 // pred_check
      _
    $region23: #{tpu_custom_call.1} parent=1 // pred_check_branch
      %721 = sbr.rel (0) target = $region25
    $region24: #{tpu_custom_call.1} parent=1 // pred_region
      %723 = dma.done [#allocation4], 16
    $region25: #{tpu_custom_call.1} parent=1 // pred_fallthru
      _
    %724 = vsyncpa [#allocation3], 1
    %725 = vsyncpa [#allocation6], 1
    %726 = vsyncpa [#allocation4], 1

</llo_original>
